<compile_context>
chip_gen: v7x
topology: tpu7x:2x2x1
jax: 0.10.0
libtpu: 0.0.40
codegen_flags: <defaults>
</compile_context>

<pallas_src>
import functools
import operator
from typing import Dict

import jax
import jax.numpy as jnp
from jax.experimental import pallas as pl
from jax.experimental.pallas import tpu as pltpu


def _round_up(x: int, m: int) -> int:
    return ((x + m - 1) // m) * m


def _cartesian_embed_kernel(codes_ref, table_ref, o_ref, *, radix_weights):
    # codes_ref: (TB, V) int32  -- per-variable indices for this batch tile
    # table_ref: (Np, Hp) f32   -- zero-padded embedding table (VMEM resident)
    # o_ref:     (TB, Hp) f32
    codes = codes_ref[...]                                     # (TB, V) int32
    # Mixed-radix combine, unrolled with Python-int immediates so no array
    # constant gets captured by the kernel closure.
    flat = codes[:, 0:1] * radix_weights[0]                    # (TB, 1)
    for i in range(1, len(radix_weights)):
        flat = flat + codes[:, i:i + 1] * radix_weights[i]

    n_pad = table_ref.shape[0]
    row_ids = jax.lax.broadcasted_iota(jnp.int32, (1, n_pad), 1)   # (1, Np)
    onehot = (flat == row_ids).astype(table_ref.dtype)             # (TB, Np)
    o_ref[...] = jnp.dot(onehot, table_ref[...],
                         preferred_element_type=jnp.float32).astype(o_ref.dtype)


def cartesian_prod_embedding_forward(codes, table_padded, radix_weights, hidden_size):
    """codes: (B, V) int32; table_padded: (Np, Hp) f32 -> (B, hidden_size) f32."""
    B, V = codes.shape
    Np, Hp = table_padded.shape
    # Batch tile: multiple of 8 sublanes; cap at 128 rows so (TB, Np) one-hot and
    # (TB, Hp) output tiles stay well inside VMEM (incl. v7x's 64 MiB scratchpad).
    TB = 128 if B >= 128 else _round_up(max(B, 1), 8)
    pB = _round_up(B, TB)
    if pB != B:
        # pad rows select row 0; sliced off below
        codes = jnp.pad(codes, ((0, pB - B), (0, 0)))

    kernel = functools.partial(_cartesian_embed_kernel,
                               radix_weights=tuple(int(w) for w in radix_weights))
    out = pl.pallas_call(
        kernel,
        out_shape=jax.ShapeDtypeStruct((pB, Hp), table_padded.dtype),
        grid_spec=pl.GridSpec(
            grid=(pB // TB,),
            in_specs=[
                pl.BlockSpec((TB, V), lambda i: (i, 0)),
                pl.BlockSpec((Np, Hp), lambda i: (0, 0)),   # resident across batch tiles
            ],
            out_specs=pl.BlockSpec((TB, Hp), lambda i: (i, 0)),
        ),
        compiler_params=pltpu.CompilerParams(
            dimension_semantics=("parallel",)),
    )(codes, table_padded)
    return out[:B, :hidden_size]


class CartesianProdEmbedding:
    """JAX/Pallas port of the PyTorch CartesianProdEmbedding."""

    def __init__(self, hidden_size: int, seed: int = 0, **names_to_num_classes: int):
        if not names_to_num_classes:
            raise ValueError("need at least one categorical variable")
        self.names_to_classes: Dict[str, int] = dict(names_to_num_classes)
        self.n_variables = len(self.names_to_classes)
        # (PyTorch reference uses reduce(mul, items()); the intended table size
        # is the product of the class counts.)
        self.total_n_embeddings = functools.reduce(
            operator.mul, self.names_to_classes.values())
        self.hidden_size = hidden_size

        # Mixed-radix weights matching the literal tuple_to_index / dict_to_index:
        #   result += arg_i * prev_classes ; prev_classes = num_classes_i
        classes = list(self.names_to_classes.values())
        self.radix_weights = [1] + classes[:-1]

        # nn.Embedding default init: N(0, 1).  Zero-pad the table to 128-multiples
        # in both dims so every kernel load/store is lane/sublane-dense.
        key = jax.random.PRNGKey(seed)
        self.table = jax.random.normal(
            key, (self.total_n_embeddings, hidden_size), jnp.float32)
        n_pad = _round_up(self.total_n_embeddings, 128)
        h_pad = _round_up(hidden_size, 128)
        self.table_padded = (
            jnp.zeros((n_pad, h_pad), jnp.float32)
            .at[:self.total_n_embeddings, :hidden_size].set(self.table))

    def __call__(self, *args, **kwargs):
        if args:
            cols = list(args)
        elif kwargs:
            cols = [kwargs[name] for name in self.names_to_classes]
        else:
            raise ValueError
        cols = [jnp.asarray(c, jnp.int32) for c in cols]
        scalar_input = all(c.ndim == 0 for c in cols)
        codes = jnp.stack([c.reshape(-1) for c in cols], axis=-1)   # (B, V)
        out = cartesian_prod_embedding_forward(
            codes, self.table_padded, self.radix_weights, self.hidden_size)
        return out[0] if scalar_input else out


def _reference(embedder: CartesianProdEmbedding, codes: jax.Array) -> jax.Array:
    radix = jnp.asarray(embedder.radix_weights, jnp.int32)
    flat = jnp.sum(codes * radix[None, :], axis=-1)
    return jnp.take(embedder.table, flat, axis=0)


if __name__ == "__main__":
    hidden = 64
    classes = {"a": 3, "b": 4, "c": 5}          # total table = 60 rows
    emb = CartesianProdEmbedding(hidden, seed=0, **classes)

    batch = 8
    rng = jax.random.PRNGKey(0)
    keys = jax.random.split(rng, len(classes))
    inputs = {
        name: jax.random.randint(k, (batch,), 0, n, jnp.int32)
        for (name, n), k in zip(classes.items(), keys)
    }

    out_kwargs = jax.block_until_ready(emb(**inputs))                       # kwargs path
    out_args = jax.block_until_ready(emb(*[inputs[n] for n in classes]))    # args path

    codes = jnp.stack([inputs[n] for n in classes], axis=-1)
    ref = _reference(emb, codes)

    assert out_kwargs.shape == (batch, hidden)
    assert out_args.shape == (batch, hidden)
    assert jnp.allclose(out_kwargs, ref, atol=1e-5, rtol=1e-5)
    assert jnp.allclose(out_args, ref, atol=1e-5, rtol=1e-5)

    print("KERNEL_OK")
</pallas_src>

<mosaic_0001>
module attributes {stable_mosaic.version = 11 : i64} {
  func.func @_cartesian_embed_kernel(%arg0: i32, %arg1: memref<8x3xi32, #tpu.memory_space<vmem>>, %arg2: memref<128x128xf32, #tpu.memory_space<vmem>>, %arg3: memref<8x128xf32, #tpu.memory_space<vmem>>) attributes {dimension_semantics = [#tpu.dimension_semantics<parallel>], iteration_bounds = array<i64: 1>, scalar_prefetch = 0 : i64, scratch_operands = 0 : i64, tpu.core_type = #tpu.core_type<tc>, window_params = [{transform_indices = @transform_0, window_bounds = array<i64: 8, 3>}, {pipeline_mode = #tpu.pipeline_mode<synchronous>, transform_indices = @transform_1, window_bounds = array<i64: 128, 128>}, {transform_indices = @transform_2, window_bounds = array<i64: 8, 128>}]} {
    %c0 = arith.constant 0 : index
    %c0_0 = arith.constant 0 : index
    %0 = vector.load %arg1[%c0, %c0_0] : memref<8x3xi32, #tpu.memory_space<vmem>>, vector<8x3xi32>
    %1 = vector.extract_strided_slice %0 {offsets = [0, 0], sizes = [8, 1], strides = [1, 1]} : vector<8x3xi32> to vector<8x1xi32>
    %c1_i32 = arith.constant 1 : i32
    %2 = vector.broadcast %c1_i32 : i32 to vector<8x1xi32>
    %3 = arith.muli %1, %2 : vector<8x1xi32>
    %4 = vector.extract_strided_slice %0 {offsets = [0, 1], sizes = [8, 1], strides = [1, 1]} : vector<8x3xi32> to vector<8x1xi32>
    %c3_i32 = arith.constant 3 : i32
    %5 = vector.broadcast %c3_i32 : i32 to vector<8x1xi32>
    %6 = arith.muli %4, %5 : vector<8x1xi32>
    %7 = arith.addi %3, %6 : vector<8x1xi32>
    %8 = vector.extract_strided_slice %0 {offsets = [0, 2], sizes = [8, 1], strides = [1, 1]} : vector<8x3xi32> to vector<8x1xi32>
    %c4_i32 = arith.constant 4 : i32
    %9 = vector.broadcast %c4_i32 : i32 to vector<8x1xi32>
    %10 = arith.muli %8, %9 : vector<8x1xi32>
    %11 = arith.addi %7, %10 : vector<8x1xi32>
    %12 = tpu.iota {dimensions = array<i32: 1>} : vector<1x128xi32>
    %13 = vector.broadcast %11 : vector<8x1xi32> to vector<8x128xi32>
    %14 = vector.broadcast %12 : vector<1x128xi32> to vector<8x128xi32>
    %15 = arith.cmpi eq, %13, %14 : vector<8x128xi32>
    %16 = arith.extui %15 : vector<8x128xi1> to vector<8x128xi32>
    %17 = arith.sitofp %16 : vector<8x128xi32> to vector<8x128xf32>
    %c0_1 = arith.constant 0 : index
    %c0_2 = arith.constant 0 : index
    %18 = vector.load %arg2[%c0_1, %c0_2] : memref<128x128xf32, #tpu.memory_space<vmem>>, vector<128x128xf32>
    %cst = arith.constant dense<0.000000e+00> : vector<8x128xf32>
    %19 = tpu.matmul %17, %18, %cst {dimension_numbers = #tpu.dot_dimension_numbers<[1], [0], [0], [1], [0, 0, 1, 1], [], []>} : vector<8x128xf32>, vector<128x128xf32>, vector<8x128xf32> -> vector<8x128xf32>
    %c0_3 = arith.constant 0 : index
    %c0_4 = arith.constant 0 : index
    %20 = vector.load %arg3[%c0_3, %c0_4] : memref<8x128xf32, #tpu.memory_space<vmem>>, vector<8x128xf32>
    tpu.vector_store %arg3[%c0_3, %c0_4], %19 {strides = array<i32>} : memref<8x128xf32, #tpu.memory_space<vmem>>, vector<8x128xf32>,
    return
  }
  func.func @transform_0(%arg0: i32) -> (i32, i32) {
    %c0_i32 = arith.constant 0 : i32
    %c0_i32_0 = arith.constant 0 : i32
    return %arg0, %c0_i32 : i32, i32
  }
  func.func @transform_1(%arg0: i32) -> (i32, i32) {
    %c0_i32 = arith.constant 0 : i32
    %c0_i32_0 = arith.constant 0 : i32
    %c0_i32_1 = arith.constant 0 : i32
    return %c0_i32, %c0_i32_0 : i32, i32
  }
  func.func @transform_2(%arg0: i32) -> (i32, i32) {
    %c0_i32 = arith.constant 0 : i32
    %c0_i32_0 = arith.constant 0 : i32
    return %arg0, %c0_i32 : i32, i32
  }
}

</mosaic_0001>

<llo_original>
// kernel: tpu_custom_call.1
$region0: #{tpu_custom_call.1}
  #allocation0 [shape = 'u32[]', space=smem, size = 0x4, offset = 0x4, fixed_abs, tag = 'smem constant byte address 0x4 - core index']
  #allocation1 [shape = 'u32[144,128]{1,0:T(1,128)}', space=vmem, size = 0x12000, scoped, tag = 'internal scratch']
  %s0 = inlined_call_operand.vmem [shape: s32[8,3], index: 0, kind: input, shape index: {}]
  %s1 = inlined_call_operand.hbm [shape: f32[128,128], index: 1, kind: input, shape index: {}]
  %s2 = inlined_call_operand.hbm [shape: f32[8,128], index: 2, kind: output, shape index: {}]
  %s3 = sld [smem:[#allocation0]]
  $region22: #{tpu_custom_call.1} parent=0
    _
  %s5 = ssub.s32 1, %s3
  %s6 = scalar_select 0, %s5, %s3
  $region1: #{tpu_custom_call.1} parent=0
    #allocation2 [shape = 'u8[65536]{0}', space=vmem, size = 0x10000, scoped, tag = 'input window, operand 1, single buffered']
    #allocation3 [shape = 's32[1]{0}', space=sflag, size = 0x4, scoped, tag = 'scoped memory for tpu_custom_call.1']
    #allocation4 [shape = 's32[1]{0}', space=sflag, size = 0x4, scoped, tag = 'scoped memory for tpu_custom_call.1']
    #allocation5 [shape = 'u8[4096]{0}', space=vmem, size = 0x1000, scoped, tag = 'output window, operand 0, single buffered']
    %7 = vsyncpa [#allocation3], 0
    %8 = vsyncpa [#allocation4], 0
    // Predicated region
    $region2: #{tpu_custom_call.1} parent=1 // pred_check
      _
    $region3: #{tpu_custom_call.1} parent=1 // pred_check_branch
      %10 = sbr.rel (0) target = $region5
    $region4: #{tpu_custom_call.1} parent=1 // pred_region
      _
    $region5: #{tpu_custom_call.1} parent=1 // pred_fallthru
      _
    // Predicated region
    $region6: #{tpu_custom_call.1} parent=1 // pred_check
      _
    $region7: #{tpu_custom_call.1} parent=1 // pred_check_branch
      %12 = sbr.rel (0) target = $region9
    $region8: #{tpu_custom_call.1} parent=1 // pred_region
      %s14 = ssub.s32 2048, 2048
      %15 = vsyncadd [#allocation3], %s14
      %s16 = sshll.u32 [#allocation2], 4
      %s17 = int_to_ptr.vmem [resolvable:$true] %s16
      %22 = dma.hbm_to_vmem [thread:$0]  %s1, 2048, %s17, [#allocation3], 128, 128, 8
    $region9: #{tpu_custom_call.1} parent=1 // pred_fallthru
      _
    // Predicated region
    $region10: #{tpu_custom_call.1} parent=1 // pred_check
      _
    $region11: #{tpu_custom_call.1} parent=1 // pred_check_branch
      %24 = sbr.rel (0) target = $region13
    $region12: #{tpu_custom_call.1} parent=1 // pred_region
      %25 = dma.done [#allocation3], 2048
    $region13: #{tpu_custom_call.1} parent=1 // pred_fallthru
      _
    %v26 = vld [vmem:[%s0] sm:$0xff]
    %v27 = vmul.u32 %v26, 3
    %28 = vrot.lane.b32.xlu0 %v27, 127
    %v29 = vpop.permute.xlu0 %28
    %v30 = vadd.s32 %v26, %v29
    %v31 = vmul.u32 %v26, 4
    %32 = vrot.lane.b32.xlu0 %v31, 126
    %v33 = vpop.permute.xlu0 %32
    %v34 = vadd.s32 %v30, %v33
    %v35 = vlaneseq
    %v36 = vand.u32 %v35, 127
    %37 = vset.pattern.permute.xlu0 0
    %38 = vperm.xlu0 %37, %v34
    %v39 = vpop.permute.xlu0 %38
    %vm40 = vcmp.eq.s32.totalorder %v39, %v36
    %v41 = vsel %vm40, 1, 0
    %v42 = vcvt.s32.f32 %v41
    %v43 = vld [vmem:[#allocation2] sm:$0xff]
    %v44 = vld [vmem:[#allocation2 + $0x8] sm:$0xff]
    %v45 = vld [vmem:[#allocation2 + $0x10] sm:$0xff]
    %v46 = vld [vmem:[#allocation2 + $0x18] sm:$0xff]
    %v47 = vld [vmem:[#allocation2 + $0x20] sm:$0xff]
    %v48 = vld [vmem:[#allocation2 + $0x28] sm:$0xff]
    %v49 = vld [vmem:[#allocation2 + $0x30] sm:$0xff]
    %v50 = vld [vmem:[#allocation2 + $0x38] sm:$0xff]
    %v51 = vld [vmem:[#allocation2 + $0x40] sm:$0xff]
    %v52 = vld [vmem:[#allocation2 + $0x48] sm:$0xff]
    %v53 = vld [vmem:[#allocation2 + $0x50] sm:$0xff]
    %v54 = vld [vmem:[#allocation2 + $0x58] sm:$0xff]
    %v55 = vld [vmem:[#allocation2 + $0x60] sm:$0xff]
    %v56 = vld [vmem:[#allocation2 + $0x68] sm:$0xff]
    %v57 = vld [vmem:[#allocation2 + $0x70] sm:$0xff]
    %v58 = vld [vmem:[#allocation2 + $0x78] sm:$0xff]
    %59 = vmatprep.subr.mxu0 0.0
    %60 = vmatpush1.msra.mxu0 %v43
    %61 = vmatprep.subr.mxu0 0.0
    %62 = vmatpush1.msra.mxu0 %v44
    %63 = vmatprep.subr.mxu0 0.0
    %64 = vmatpush1.msra.mxu0 %v45
    %65 = vmatprep.subr.mxu0 0.0
    %66 = vmatpush1.msra.mxu0 %v46
    %67 = vmatprep.subr.mxu0 0.0
    %68 = vmatpush1.msra.mxu0 %v47
    %69 = vmatprep.subr.mxu0 0.0
    %70 = vmatpush1.msra.mxu0 %v48
    %71 = vmatprep.subr.mxu0 0.0
    %72 = vmatpush1.msra.mxu0 %v49
    %73 = vmatprep.subr.mxu0 0.0
    %74 = vmatpush1.msra.mxu0 %v50
    %75 = vmatprep.subr.mxu0 0.0
    %76 = vmatpush1.msra.mxu0 %v51
    %77 = vmatprep.subr.mxu0 0.0
    %78 = vmatpush1.msra.mxu0 %v52
    %79 = vmatprep.subr.mxu0 0.0
    %80 = vmatpush1.msra.mxu0 %v53
    %81 = vmatprep.subr.mxu0 0.0
    %82 = vmatpush1.msra.mxu0 %v54
    %83 = vmatprep.subr.mxu0 0.0
    %84 = vmatpush1.msra.mxu0 %v55
    %85 = vmatprep.subr.mxu0 0.0
    %86 = vmatpush1.msra.mxu0 %v56
    %87 = vmatprep.subr.mxu0 0.0
    %88 = vmatpush1.msra.mxu0 %v57
    %89 = vmatprep.subr.mxu0 0.0
    %90 = vmatpush1.msra.mxu0 %v58
    %91 = vmatprep.subr.mxu0 0.0
    %92 = vmatpush1.msra.mxu0 0.0
    %93 = vmatprep.subr.mxu0 0.0
    %94 = vmatpush1.msra.mxu0 0.0
    %95 = vmatprep.subr.mxu0 0.0
    %96 = vmatpush1.msra.mxu0 0.0
    %97 = vmatprep.subr.mxu0 0.0
    %98 = vmatpush1.msra.mxu0 0.0
    %99 = vmatprep.subr.mxu0 0.0
    %100 = vmatpush1.msra.mxu0 0.0
    %101 = vmatprep.subr.mxu0 0.0
    %102 = vmatpush1.msra.mxu0 0.0
    %103 = vmatprep.subr.mxu0 0.0
    %104 = vmatpush1.msra.mxu0 0.0
    %105 = vmatprep.subr.mxu0 0.0
    %106 = vmatpush1.msra.mxu0 0.0
    %107 = vmatprep.subr.mxu0 0.0
    %108 = vmatpush1.msra.mxu0 0.0
    %109 = vmatprep.subr.mxu0 0.0
    %110 = vmatpush1.msra.mxu0 0.0
    %111 = vmatprep.subr.mxu0 0.0
    %112 = vmatpush1.msra.mxu0 0.0
    %113 = vmatprep.subr.mxu0 0.0
    %114 = vmatpush1.msra.mxu0 0.0
    %115 = vmatprep.subr.mxu0 0.0
    %116 = vmatpush1.msra.mxu0 0.0
    %117 = vmatprep.subr.mxu0 0.0
    %118 = vmatpush1.msra.mxu0 0.0
    %119 = vmatprep.subr.mxu0 0.0
    %120 = vmatpush1.msra.mxu0 0.0
    %121 = vmatprep.subr.mxu0 0.0
    %122 = vmatpush1.msra.mxu0 0.0
    %123 = vmatprep.mubr.f32.mxu0 0.0
    %124 = vmatmul.mubr.f32.gmra.mrb[0].mxu0 %v42
    %v125 = vpop.f32.mrb[0].mxu0
    %v126 = vadd.f32 0.0, %v125
    %v127 = vpop.f32.mrb[0].mxu0
    %128 = vdwg.mxu0
    %129 = vst [vmem:[#allocation5] sm:$0xff] %v126
    // Predicated region
    $region14: #{tpu_custom_call.1} parent=1 // pred_check
      _
    $region15: #{tpu_custom_call.1} parent=1 // pred_check_branch
      %131 = sbr.rel (0) target = $region17
    $region16: #{tpu_custom_call.1} parent=1 // pred_region
      %s133 = ssub.s32 128, 128
      %134 = vsyncadd [#allocation4], %s133
      %s136 = sshll.u32 [#allocation5], 4
      %s137 = int_to_ptr.vmem [resolvable:$true] %s136
      %139 = dma.vmem_to_hbm [thread:$0]  %s137, 128, %s2, [#allocation4]
    $region17: #{tpu_custom_call.1} parent=1 // pred_fallthru
      _
    // Predicated region
    $region18: #{tpu_custom_call.1} parent=1 // pred_check
      _
    $region19: #{tpu_custom_call.1} parent=1 // pred_check_branch
      %141 = sbr.rel (0) target = $region21
    $region20: #{tpu_custom_call.1} parent=1 // pred_region
      %142 = dma.done [#allocation4], 128
    $region21: #{tpu_custom_call.1} parent=1 // pred_fallthru
      _
    %143 = vsyncpa [#allocation3], 1
    %144 = vsyncpa [#allocation4], 1

</llo_original>
